<compile_context>
chip_gen: v6e
topology: v6e:2x2x1
jax: 0.10.0
libtpu: 0.0.40
codegen_flags: <defaults>
</compile_context>

<pallas_src>
import jax
import jax.numpy as jnp
from jax import lax
from jax.experimental import pallas as pl
from jax.experimental.pallas import tpu as pltpu


# --------------------------------------------------------------------------
# Sizing helpers
# --------------------------------------------------------------------------

def _vmem_capacity_bytes():
    """Physical VMEM of the local chip; conservative default if unknown."""
    try:
        return int(pltpu.get_tpu_info().vmem_capacity_bytes)
    except Exception:
        return 64 * 1024 * 1024  # v7x-sized default: safe everywhere


def _pad_rows(rows, itemsize):
    """Rows padded to the native sublane tiling for this dtype (bf16 packs 16)."""
    group = 8 * max(1, 4 // int(itemsize))
    return -(-rows // group) * group


def _per_lane_bytes(T, C, Cf, n_masks, itemsize, shared_mask):
    """Conservative per-lane VMEM estimate: double-buffered input blocks,
    scratch accumulators and the live f32 temporaries inside the body."""
    tc, tcf = T * C, T * Cf
    in_bytes = (2 * 2 * _pad_rows(tc, itemsize)              # px, tx  (x2 buffers)
                + n_masks * 2 * _pad_rows(tcf, itemsize)     # masks   (x2 buffers)
                ) * itemsize
    scratch_bytes = 8 * 4 + (_pad_rows(tc, 4) * 4 if shared_mask else 0)
    # live f32 values: px/tx casts, d, |d|, dd, df, ddf, adc, |tf|, |tm|, slack
    tmp_rows = 4 * tc + 4 * tcf + 2 * max(T - 1, 1) * C + T + 16
    return in_bytes + scratch_bytes + tmp_rows * 4


def _pick_lane_tile(hw, per_lane_bytes, budget_bytes, max_tile, min_tiles=2):
    """Largest lane tile (multiple of 128 dividing hw) inside the VMEM budget,
    preferring >= min_tiles tiles so the 'parallel' grid axis can use both
    TensorCores on v7x."""
    limit = min(max_tile, max(128, budget_bytes // max(per_lane_bytes, 1)))
    if hw <= 128:
        return hw
    if hw % 128 != 0:
        # TODO(synk): a non-128-multiple lane extent cannot be tiled cleanly;
        # fall back to one full-width tile (the scoped VMEM limit is bumped in
        # the wrapper when this block is large).
        return hw
    divisors = [c for c in range(128, hw + 1, 128) if hw % c == 0]
    preferred = [c for c in divisors if c <= limit and hw // c >= min_tiles]
    if preferred:
        return max(preferred)
    fitting = [c for c in divisors if c <= limit]
    if fitting:
        return max(fitting)
    return 128


# --------------------------------------------------------------------------
# Kernel
# --------------------------------------------------------------------------

def _make_kernel(T, C, Cf, has_mouth, shared_mask):
    """Builds the kernel for static (T, C, Cf, has_mouth, shared_mask)."""

    def kernel(*refs):
        if has_mouth:
            px_ref, tx_ref, pf_ref, tf_ref, tm_ref = refs[:5]
            rest = refs[5:]
        else:
            px_ref, tx_ref, pf_ref, tf_ref = refs[:4]
            tm_ref = None
            rest = refs[4:]
        if shared_mask:
            out_ref, acc_ref, ad_ref = rest
        else:
            out_ref, acc_ref = rest

        b = pl.program_id(1)
        n_b = pl.num_programs(1)

        @pl.when(b == 0)
        def _init():
            acc_ref[...] = jnp.zeros_like(acc_ref)

        # One DMA'd read of each block in its native dtype, one cast to f32.
        px = px_ref[...].astype(jnp.float32)    # (T*C,  THW)
        tx = tx_ref[...].astype(jnp.float32)    # (T*C,  THW)
        pf = pf_ref[...].astype(jnp.float32)    # (T*Cf, THW)
        tf = tf_ref[...].astype(jnp.float32)    # (T*Cf, THW)

        def lane_sum(v):                        # sublanes -> (1, THW)
            return jnp.sum(v, axis=0, keepdims=True)

        d = px - tx                             # shared difference, reused everywhere
        ad = jnp.abs(d)
        df = pf - tf
        # |x*m| == |x|*|m| bit-exactly; abs kept so signed masks stay correct.
        atf = jnp.abs(tf)
        atm = jnp.abs(tm_ref[...].astype(jnp.float32)) if has_mouth else None

        acc_ref[0:1, :] += lane_sum(ad)                  # l1 (full |d|)
        acc_ref[2:3, :] += lane_sum(jnp.abs(df))         # mask_l1

        if shared_mask:
            # Cf == 1 < C: sum |d| over the C channels of each frame.  |d| is
            # spilled once to f32 scratch and gathered back with stride-C ref
            # loads, so px/tx are never re-streamed or re-cast.
            ad_ref[...] = ad
            adc = ad_ref[pl.ds(0, T, stride=C), :]       # (T, THW)
            for c in range(1, C):
                adc = adc + ad_ref[pl.ds(c, T, stride=C), :]
            acc_ref[1:2, :] += lane_sum(adc * atf)       # fgr_l1
            if has_mouth:
                acc_ref[5:6, :] += lane_sum(adc * atm)   # mouth_l1
        else:
            # Cf == C (or C == 1): masks align elementwise with the packed rows.
            acc_ref[1:2, :] += lane_sum(ad * atf)
            if has_mouth:
                acc_ref[5:6, :] += lane_sum(ad * atm)

        if T > 1:
            # Frame difference == stride-C row difference in the packed layout.
            dd = d[C:, :] - d[:-C, :]                    # ((T-1)*C,  THW)
            acc_ref[3:4, :] += lane_sum(dd * dd)         # temp_coherence
            ddf = df[Cf:, :] - df[:-Cf, :]               # ((T-1)*Cf, THW)
            acc_ref[4:5, :] += lane_sum(ddf * ddf)       # temp_fgr_coherence

        @pl.when(b == n_b - 1)
        def _finalize():
            # Fold the THW lanes of the resident accumulator down to 128 lanes
            # (aligned 128-wide slice adds; cheap, once per lane tile) and emit
            # a tiny (8, 128) block -- no (8, HW) partial round-trips HBM.
            a = acc_ref[...]
            thw = acc_ref.shape[1]
            nfull = thw // 128
            rem = thw - nfull * 128
            if nfull > 0:
                folded = a[:, 0:128]
                for j in range(1, nfull):
                    folded = folded + a[:, j * 128:(j + 1) * 128]
            else:
                folded = jnp.zeros((8, 128), jnp.float32)
            if rem > 0:
                tail = jnp.sum(a[:, nfull * 128:], axis=1, keepdims=True)
                lane0 = lax.broadcasted_iota(jnp.int32, (8, 128), 1) == 0
                folded = folded + jnp.where(lane0, tail, jnp.float32(0.0))
            out_ref[...] = folded

    return kernel


# --------------------------------------------------------------------------
# Wrapper
# --------------------------------------------------------------------------

def temporal_pix2pix_loss(pred_x, pred_fgr, true_x, true_fgr, true_mouth=None):
    assert pred_x.ndim == 5 and true_x.ndim == 5
    B, T, C, H, W = pred_x.shape
    assert true_x.shape == pred_x.shape
    Bf, Tf, Cf, Hf, Wf = pred_fgr.shape
    assert (Bf, Tf, Hf, Wf) == (B, T, H, W)
    assert true_fgr.shape == pred_fgr.shape
    assert Cf == C or Cf == 1, "mask channels must be 1 or equal to C"
    has_mouth = true_mouth is not None
    if has_mouth:
        assert true_mouth.shape == pred_fgr.shape
    shared_mask = (Cf == 1 and C > 1)

    HW = H * W
    TC, TCf = T * C, T * Cf

    # Free, contiguous reshapes; arrays stay in their native dtype.
    px = pred_x.reshape(B, TC, HW)
    tx = true_x.reshape(B, TC, HW)
    pf = pred_fgr.reshape(B, TCf, HW)
    tf = true_fgr.reshape(B, TCf, HW)
    inputs = [px, tx, pf, tf]
    if has_mouth:
        inputs.append(true_mouth.reshape(B, TCf, HW))

    n_masks = 3 if has_mouth else 2
    itemsize = max(jnp.dtype(a.dtype).itemsize for a in inputs)

    # Generation-aware sizing: 64 MiB physical VMEM on v7x vs 128 MiB v5e/v6e.
    vmem_cap = _vmem_capacity_bytes()
    big_vmem = vmem_cap >= 100 * 1024 * 1024
    max_tile = 32768 if big_vmem else 16384
    vmem_limit = min(vmem_cap // 2, 48 * 1024 * 1024)
    per_lane = _per_lane_bytes(T, C, Cf, n_masks, itemsize, shared_mask)
    THW = _pick_lane_tile(HW, per_lane, vmem_limit // 2, max_tile)
    n_h = HW // THW
    if per_lane * THW * 2 > vmem_limit:        # non-128-multiple fallback tiles
        vmem_limit = min(int(vmem_cap * 0.9),
                         per_lane * THW * 2 + 8 * 1024 * 1024)

    # NOTE: on v5e (lowest HBM BW, 128 MiB VMEM) the two big x inputs can
    # additionally use pipeline_mode=pl.Buffered(3) to hide tile-boundary DMA;
    # left at the default depth 2 here to keep the v7x VMEM budget comfortable.
    x_spec = pl.BlockSpec((None, TC, THW), lambda h, b: (b, 0, h))
    f_spec = pl.BlockSpec((None, TCf, THW), lambda h, b: (b, 0, h))
    in_specs = [x_spec, x_spec, f_spec, f_spec] + ([f_spec] if has_mouth else [])

    scratch_shapes = [pltpu.VMEM((8, THW), jnp.float32)]      # resident accumulator
    if shared_mask:
        scratch_shapes.append(pltpu.VMEM((TC, THW), jnp.float32))  # |d| spill

    partial = pl.pallas_call(
        _make_kernel(T, C, Cf, has_mouth, shared_mask),
        out_shape=jax.ShapeDtypeStruct((8, n_h * 128), jnp.float32),
        grid=(n_h, B),
        in_specs=in_specs,
        out_specs=pl.BlockSpec((8, 128), lambda h, b: (0, h)),
        scratch_shapes=scratch_shapes,
        compiler_params=pltpu.CompilerParams(
            dimension_semantics=("parallel", "arbitrary"),
            vmem_limit_bytes=int(vmem_limit),
        ),
    )(*inputs)

    sums = jnp.sum(partial, axis=1)  # (8,) -- rows 6/7 are zero padding

    c_bcast = max(C, Cf)
    n_x = B * T * C * HW
    n_bc = B * T * c_bcast * HW
    n_f = B * T * Cf * HW
    n_dx = B * (T - 1) * C * HW
    n_df = B * (T - 1) * Cf * HW

    loss = {}
    loss['l1'] = sums[0] / n_x
    loss['fgr_l1'] = sums[1] / n_bc * 2.0
    loss['mask_l1'] = sums[2] / n_f
    # NOTE: for T == 1 these divide 0 by 0 and give NaN, matching F.mse_loss on
    # an empty tensor in the PyTorch reference (and it poisons 'total').
    loss['temp_coherence'] = sums[3] / n_dx * 5.0
    loss['temp_fgr_coherence'] = sums[4] / n_df * 5.0
    loss['total'] = (loss['l1'] + loss['fgr_l1'] + loss['mask_l1']
                     + loss['temp_coherence'] + loss['temp_fgr_coherence'])
    if has_mouth:
        loss['mouth_l1'] = sums[5] / n_bc * 5.0
        loss['total'] = loss['total'] + loss['mouth_l1']
    return loss


# --------------------------------------------------------------------------
# Plain-JAX reference & self-test
# --------------------------------------------------------------------------

def _reference_loss(pred_x, pred_fgr, true_x, true_fgr, true_mouth=None):
    """Plain-JAX reference mirroring the PyTorch forward."""
    loss = {}
    loss['l1'] = jnp.mean(jnp.abs(pred_x - true_x))
    loss['fgr_l1'] = jnp.mean(jnp.abs(pred_x * true_fgr - true_x * true_fgr)) * 2
    loss['mask_l1'] = jnp.mean(jnp.abs(pred_fgr - true_fgr))
    loss['temp_coherence'] = jnp.mean(
        ((pred_x[:, 1:] - pred_x[:, :-1]) - (true_x[:, 1:] - true_x[:, :-1])) ** 2) * 5
    loss['temp_fgr_coherence'] = jnp.mean(
        ((pred_fgr[:, 1:] - pred_fgr[:, :-1]) - (true_fgr[:, 1:] - true_fgr[:, :-1])) ** 2) * 5
    loss['total'] = (loss['l1'] + loss['fgr_l1'] + loss['mask_l1']
                     + loss['temp_coherence'] + loss['temp_fgr_coherence'])
    if true_mouth is not None:
        loss['mouth_l1'] = jnp.mean(jnp.abs(pred_x * true_mouth - true_x * true_mouth)) * 5
        loss['total'] = loss['total'] + loss['mouth_l1']
    return loss


if __name__ == "__main__":
    # Small shapes for the correctness check: (B, T, C, H, W).
    # (Do NOT benchmark at this size; per-grid-step overhead dominates here.)
    B, T, C, H, W = 2, 4, 3, 16, 16
    key = jax.random.PRNGKey(0)
    k1, k2, k3, k4, k5, k6, k7 = jax.random.split(key, 7)

    pred_x = jax.random.normal(k1, (B, T, C, H, W), jnp.float32)
    true_x = jax.random.normal(k2, (B, T, C, H, W), jnp.float32)
    pred_fgr = jax.random.uniform(k3, (B, T, 1, H, W), jnp.float32)
    true_fgr = jax.random.uniform(k4, (B, T, 1, H, W), jnp.float32)
    true_mouth = jax.random.uniform(k5, (B, T, 1, H, W), jnp.float32)

    loss_fn = jax.jit(temporal_pix2pix_loss)

    # Shared-mask path (Cf=1 < C) with mouth.
    out = loss_fn(pred_x, pred_fgr, true_x, true_fgr, true_mouth)
    jax.block_until_ready(out['total'])
    ref = _reference_loss(pred_x, pred_fgr, true_x, true_fgr, true_mouth)
    for name in ref:
        assert jnp.allclose(out[name], ref[name], rtol=1e-5, atol=1e-5), (
            f"mismatch in {name}: {out[name]} vs {ref[name]}")

    # Shared-mask path without mouth (4-input kernel variant).
    out_nm = loss_fn(pred_x, pred_fgr, true_x, true_fgr, None)
    jax.block_until_ready(out_nm['total'])
    ref_nm = _reference_loss(pred_x, pred_fgr, true_x, true_fgr)
    for name in ref_nm:
        assert jnp.allclose(out_nm[name], ref_nm[name], rtol=1e-5, atol=1e-5), (
            f"mismatch (no mouth) in {name}: {out_nm[name]} vs {ref_nm[name]}")

    # Elementwise-mask path (Cf == C): exercises the non-shared kernel branch.
    pred_fgr3 = jax.random.uniform(k6, (B, T, C, H, W), jnp.float32)
    true_fgr3 = jax.random.uniform(k7, (B, T, C, H, W), jnp.float32)
    out_ew = loss_fn(pred_x, pred_fgr3, true_x, true_fgr3, None)
    jax.block_until_ready(out_ew['total'])
    ref_ew = _reference_loss(pred_x, pred_fgr3, true_x, true_fgr3)
    for name in ref_ew:
        assert jnp.allclose(out_ew[name], ref_ew[name], rtol=1e-5, atol=1e-5), (
            f"mismatch (Cf==C) in {name}: {out_ew[name]} vs {ref_ew[name]}")

    print("KERNEL_OK")
</pallas_src>

<mosaic_0001>
module attributes {stable_mosaic.version = 11 : i64} {
  func.func @kernel(%arg0: i32, %arg1: i32, %arg2: memref<1x12x128xf32, #tpu.memory_space<vmem>>, %arg3: memref<1x12x128xf32, #tpu.memory_space<vmem>>, %arg4: memref<1x4x128xf32, #tpu.memory_space<vmem>>, %arg5: memref<1x4x128xf32, #tpu.memory_space<vmem>>, %arg6: memref<1x4x128xf32, #tpu.memory_space<vmem>>, %arg7: memref<8x128xf32, #tpu.memory_space<vmem>>, %arg8: memref<8x128xf32, #tpu.memory_space<vmem>>, %arg9: memref<12x128xf32, #tpu.memory_space<vmem>>) attributes {dimension_semantics = [#tpu.dimension_semantics<parallel>, #tpu.dimension_semantics<arbitrary>], iteration_bounds = array<i64: 2, 2>, scalar_prefetch = 0 : i64, scratch_operands = 2 : i64, tpu.core_type = #tpu.core_type<tc>, window_params = [{transform_indices = @transform_0, window_bounds = array<i64: 1, 12, 128>}, {transform_indices = @transform_1, window_bounds = array<i64: 1, 12, 128>}, {transform_indices = @transform_2, window_bounds = array<i64: 1, 4, 128>}, {transform_indices = @transform_3, window_bounds = array<i64: 1, 4, 128>}, {transform_indices = @transform_4, window_bounds = array<i64: 1, 4, 128>}, {transform_indices = @transform_5, window_bounds = array<i64: 8, 128>}]} {
    %c0_i32 = arith.constant 0 : i32
    %0 = arith.cmpi eq, %arg1, %c0_i32 : i32
    %1 = arith.extui %0 : i1 to i32
    %c0_i32_0 = arith.constant 0 : i32
    %2 = arith.cmpi ne, %1, %c0_i32_0 : i32
    scf.if %2 {
      %cst_48 = arith.constant 0.000000e+00 : f32
      %68 = vector.broadcast %cst_48 : f32 to vector<8x128xf32>
      %c0_49 = arith.constant 0 : index
      %c0_50 = arith.constant 0 : index
      %69 = vector.load %arg8[%c0_49, %c0_50] : memref<8x128xf32, #tpu.memory_space<vmem>>, vector<8x128xf32>
      tpu.vector_store %arg8[%c0_49, %c0_50], %68 {strides = array<i32>} : memref<8x128xf32, #tpu.memory_space<vmem>>, vector<8x128xf32>,
    } else {
    }
    %c0 = arith.constant 0 : index
    %c0_1 = arith.constant 0 : index
    %c0_2 = arith.constant 0 : index
    %3 = vector.load %arg2[%c0, %c0_1, %c0_2] : memref<1x12x128xf32, #tpu.memory_space<vmem>>, vector<1x12x128xf32>
    %4 = vector.shape_cast %3 : vector<1x12x128xf32> to vector<12x128xf32>
    %c0_3 = arith.constant 0 : index
    %c0_4 = arith.constant 0 : index
    %c0_5 = arith.constant 0 : index
    %5 = vector.load %arg3[%c0_3, %c0_4, %c0_5] : memref<1x12x128xf32, #tpu.memory_space<vmem>>, vector<1x12x128xf32>
    %6 = vector.shape_cast %5 : vector<1x12x128xf32> to vector<12x128xf32>
    %c0_6 = arith.constant 0 : index
    %c0_7 = arith.constant 0 : index
    %c0_8 = arith.constant 0 : index
    %7 = vector.load %arg4[%c0_6, %c0_7, %c0_8] : memref<1x4x128xf32, #tpu.memory_space<vmem>>, vector<1x4x128xf32>
    %8 = vector.shape_cast %7 : vector<1x4x128xf32> to vector<4x128xf32>
    %c0_9 = arith.constant 0 : index
    %c0_10 = arith.constant 0 : index
    %c0_11 = arith.constant 0 : index
    %9 = vector.load %arg5[%c0_9, %c0_10, %c0_11] : memref<1x4x128xf32, #tpu.memory_space<vmem>>, vector<1x4x128xf32>
    %10 = vector.shape_cast %9 : vector<1x4x128xf32> to vector<4x128xf32>
    %11 = arith.subf %4, %6 : vector<12x128xf32>
    %12 = math.absf %11 : vector<12x128xf32>
    %13 = arith.subf %8, %10 : vector<4x128xf32>
    %14 = math.absf %10 : vector<4x128xf32>
    %c0_12 = arith.constant 0 : index
    %c0_13 = arith.constant 0 : index
    %c0_14 = arith.constant 0 : index
    %15 = vector.load %arg6[%c0_12, %c0_13, %c0_14] : memref<1x4x128xf32, #tpu.memory_space<vmem>>, vector<1x4x128xf32>
    %16 = vector.shape_cast %15 : vector<1x4x128xf32> to vector<4x128xf32>
    %17 = math.absf %16 : vector<4x128xf32>
    %c0_15 = arith.constant 0 : index
    %c0_16 = arith.constant 0 : index
    %18 = vector.load %arg8[%c0_15, %c0_16] : memref<8x128xf32, #tpu.memory_space<vmem>>, vector<1x128xf32>
    %cst = arith.constant dense<0.000000e+00> : vector<128xf32>
    %19 = vector.multi_reduction <add>, %12, %cst [0] : vector<12x128xf32> to vector<128xf32>
    %20 = vector.shape_cast %19 : vector<128xf32> to vector<1x128xf32>
    %21 = arith.addf %18, %20 : vector<1x128xf32>
    %c0_17 = arith.constant 0 : index
    %c0_18 = arith.constant 0 : index
    %22 = vector.load %arg8[%c0_17, %c0_18] : memref<8x128xf32, #tpu.memory_space<vmem>>, vector<1x128xf32>
    tpu.vector_store %arg8[%c0_17, %c0_18], %21 {strides = array<i32>} : memref<8x128xf32, #tpu.memory_space<vmem>>, vector<1x128xf32>,
    %c2 = arith.constant 2 : index
    %c0_19 = arith.constant 0 : index
    %23 = vector.load %arg8[%c2, %c0_19] : memref<8x128xf32, #tpu.memory_space<vmem>>, vector<1x128xf32>
    %24 = math.absf %13 : vector<4x128xf32>
    %cst_20 = arith.constant dense<0.000000e+00> : vector<128xf32>
    %25 = vector.multi_reduction <add>, %24, %cst_20 [0] : vector<4x128xf32> to vector<128xf32>
    %26 = vector.shape_cast %25 : vector<128xf32> to vector<1x128xf32>
    %27 = arith.addf %23, %26 : vector<1x128xf32>
    %c2_21 = arith.constant 2 : index
    %c0_22 = arith.constant 0 : index
    %28 = vector.load %arg8[%c2_21, %c0_22] : memref<8x128xf32, #tpu.memory_space<vmem>>, vector<1x128xf32>
    tpu.vector_store %arg8[%c2_21, %c0_22], %27 {strides = array<i32>} : memref<8x128xf32, #tpu.memory_space<vmem>>, vector<1x128xf32>,
    %c0_23 = arith.constant 0 : index
    %c0_24 = arith.constant 0 : index
    %29 = vector.load %arg9[%c0_23, %c0_24] : memref<12x128xf32, #tpu.memory_space<vmem>>, vector<12x128xf32>
    tpu.vector_store %arg9[%c0_23, %c0_24], %12 {strides = array<i32>} : memref<12x128xf32, #tpu.memory_space<vmem>>, vector<12x128xf32>,
    %c0_25 = arith.constant 0 : index
    %c0_26 = arith.constant 0 : index
    %30 = tpu.strided_load %arg9[%c0_25, %c0_26] {strides = array<i32: 3, 1>} : memref<12x128xf32, #tpu.memory_space<vmem>>, vector<4x128xf32>
    %c1 = arith.constant 1 : index
    %c0_27 = arith.constant 0 : index
    %31 = tpu.strided_load %arg9[%c1, %c0_27] {strides = array<i32: 3, 1>} : memref<12x128xf32, #tpu.memory_space<vmem>>, vector<4x128xf32>
    %32 = arith.addf %30, %31 : vector<4x128xf32>
    %c2_28 = arith.constant 2 : index
    %c0_29 = arith.constant 0 : index
    %33 = tpu.strided_load %arg9[%c2_28, %c0_29] {strides = array<i32: 3, 1>} : memref<12x128xf32, #tpu.memory_space<vmem>>, vector<4x128xf32>
    %34 = arith.addf %32, %33 : vector<4x128xf32>
    %c1_30 = arith.constant 1 : index
    %c0_31 = arith.constant 0 : index
    %35 = vector.load %arg8[%c1_30, %c0_31] : memref<8x128xf32, #tpu.memory_space<vmem>>, vector<1x128xf32>
    %36 = arith.mulf %34, %14 : vector<4x128xf32>
    %cst_32 = arith.constant dense<0.000000e+00> : vector<128xf32>
    %37 = vector.multi_reduction <add>, %36, %cst_32 [0] : vector<4x128xf32> to vector<128xf32>
    %38 = vector.shape_cast %37 : vector<128xf32> to vector<1x128xf32>
    %39 = arith.addf %35, %38 : vector<1x128xf32>
    %c1_33 = arith.constant 1 : index
    %c0_34 = arith.constant 0 : index
    %40 = vector.load %arg8[%c1_33, %c0_34] : memref<8x128xf32, #tpu.memory_space<vmem>>, vector<1x128xf32>
    tpu.vector_store %arg8[%c1_33, %c0_34], %39 {strides = array<i32>} : memref<8x128xf32, #tpu.memory_space<vmem>>, vector<1x128xf32>,
    %c5 = arith.constant 5 : index
    %c0_35 = arith.constant 0 : index
    %41 = vector.load %arg8[%c5, %c0_35] : memref<8x128xf32, #tpu.memory_space<vmem>>, vector<1x128xf32>
    %42 = arith.mulf %34, %17 : vector<4x128xf32>
    %cst_36 = arith.constant dense<0.000000e+00> : vector<128xf32>
    %43 = vector.multi_reduction <add>, %42, %cst_36 [0] : vector<4x128xf32> to vector<128xf32>
    %44 = vector.shape_cast %43 : vector<128xf32> to vector<1x128xf32>
    %45 = arith.addf %41, %44 : vector<1x128xf32>
    %c5_37 = arith.constant 5 : index
    %c0_38 = arith.constant 0 : index
    %46 = vector.load %arg8[%c5_37, %c0_38] : memref<8x128xf32, #tpu.memory_space<vmem>>, vector<1x128xf32>
    tpu.vector_store %arg8[%c5_37, %c0_38], %45 {strides = array<i32>} : memref<8x128xf32, #tpu.memory_space<vmem>>, vector<1x128xf32>,
    %47 = vector.extract_strided_slice %11 {offsets = [3, 0], sizes = [9, 128], strides = [1, 1]} : vector<12x128xf32> to vector<9x128xf32>
    %48 = vector.extract_strided_slice %11 {offsets = [0, 0], sizes = [9, 128], strides = [1, 1]} : vector<12x128xf32> to vector<9x128xf32>
    %49 = arith.subf %47, %48 : vector<9x128xf32>
    %c3 = arith.constant 3 : index
    %c0_39 = arith.constant 0 : index
    %50 = vector.load %arg8[%c3, %c0_39] : memref<8x128xf32, #tpu.memory_space<vmem>>, vector<1x128xf32>
    %51 = arith.mulf %49, %49 : vector<9x128xf32>
    %cst_40 = arith.constant dense<0.000000e+00> : vector<128xf32>
    %52 = vector.multi_reduction <add>, %51, %cst_40 [0] : vector<9x128xf32> to vector<128xf32>
    %53 = vector.shape_cast %52 : vector<128xf32> to vector<1x128xf32>
    %54 = arith.addf %50, %53 : vector<1x128xf32>
    %c3_41 = arith.constant 3 : index
    %c0_42 = arith.constant 0 : index
    %55 = vector.load %arg8[%c3_41, %c0_42] : memref<8x128xf32, #tpu.memory_space<vmem>>, vector<1x128xf32>
    tpu.vector_store %arg8[%c3_41, %c0_42], %54 {strides = array<i32>} : memref<8x128xf32, #tpu.memory_space<vmem>>, vector<1x128xf32>,
    %56 = vector.extract_strided_slice %13 {offsets = [1, 0], sizes = [3, 128], strides = [1, 1]} : vector<4x128xf32> to vector<3x128xf32>
    %57 = vector.extract_strided_slice %13 {offsets = [0, 0], sizes = [3, 128], strides = [1, 1]} : vector<4x128xf32> to vector<3x128xf32>
    %58 = arith.subf %56, %57 : vector<3x128xf32>
    %c4 = arith.constant 4 : index
    %c0_43 = arith.constant 0 : index
    %59 = vector.load %arg8[%c4, %c0_43] : memref<8x128xf32, #tpu.memory_space<vmem>>, vector<1x128xf32>
    %60 = arith.mulf %58, %58 : vector<3x128xf32>
    %cst_44 = arith.constant dense<0.000000e+00> : vector<128xf32>
    %61 = vector.multi_reduction <add>, %60, %cst_44 [0] : vector<3x128xf32> to vector<128xf32>
    %62 = vector.shape_cast %61 : vector<128xf32> to vector<1x128xf32>
    %63 = arith.addf %59, %62 : vector<1x128xf32>
    %c4_45 = arith.constant 4 : index
    %c0_46 = arith.constant 0 : index
    %64 = vector.load %arg8[%c4_45, %c0_46] : memref<8x128xf32, #tpu.memory_space<vmem>>, vector<1x128xf32>
    tpu.vector_store %arg8[%c4_45, %c0_46], %63 {strides = array<i32>} : memref<8x128xf32, #tpu.memory_space<vmem>>, vector<1x128xf32>,
    %c1_i32 = arith.constant 1 : i32
    %65 = arith.cmpi eq, %arg1, %c1_i32 : i32
    %66 = arith.extui %65 : i1 to i32
    %c0_i32_47 = arith.constant 0 : i32
    %67 = arith.cmpi ne, %66, %c0_i32_47 : i32
    scf.if %67 {
      %c0_48 = arith.constant 0 : index
      %c0_49 = arith.constant 0 : index
      %68 = vector.load %arg8[%c0_48, %c0_49] : memref<8x128xf32, #tpu.memory_space<vmem>>, vector<8x128xf32>
      %c0_50 = arith.constant 0 : index
      %c0_51 = arith.constant 0 : index
      %69 = vector.load %arg7[%c0_50, %c0_51] : memref<8x128xf32, #tpu.memory_space<vmem>>, vector<8x128xf32>
      tpu.vector_store %arg7[%c0_50, %c0_51], %68 {strides = array<i32>} : memref<8x128xf32, #tpu.memory_space<vmem>>, vector<8x128xf32>,
    } else {
    }
    return
  }
  func.func @transform_0(%arg0: i32, %arg1: i32) -> (i32, i32, i32) {
    %c0_i32 = arith.constant 0 : i32
    %c0_i32_0 = arith.constant 0 : i32
    return %arg1, %c0_i32, %arg0 : i32, i32, i32
  }
  func.func @transform_1(%arg0: i32, %arg1: i32) -> (i32, i32, i32) {
    %c0_i32 = arith.constant 0 : i32
    %c0_i32_0 = arith.constant 0 : i32
    return %arg1, %c0_i32, %arg0 : i32, i32, i32
  }
  func.func @transform_2(%arg0: i32, %arg1: i32) -> (i32, i32, i32) {
    %c0_i32 = arith.constant 0 : i32
    %c0_i32_0 = arith.constant 0 : i32
    return %arg1, %c0_i32, %arg0 : i32, i32, i32
  }
  func.func @transform_3(%arg0: i32, %arg1: i32) -> (i32, i32, i32) {
    %c0_i32 = arith.constant 0 : i32
    %c0_i32_0 = arith.constant 0 : i32
    return %arg1, %c0_i32, %arg0 : i32, i32, i32
  }
  func.func @transform_4(%arg0: i32, %arg1: i32) -> (i32, i32, i32) {
    %c0_i32 = arith.constant 0 : i32
    %c0_i32_0 = arith.constant 0 : i32
    return %arg1, %c0_i32, %arg0 : i32, i32, i32
  }
  func.func @transform_5(%arg0: i32, %arg1: i32) -> (i32, i32) {
    %c0_i32 = arith.constant 0 : i32
    %c0_i32_0 = arith.constant 0 : i32
    return %c0_i32, %arg0 : i32, i32
  }
}

</mosaic_0001>

<llo_original>
// kernel: temporal_pix2pix_loss.1
$region0: #{temporal_pix2pix_loss.1}
  #allocation0 [shape = 'u32[]', space=smem, size = 0x4, offset = 0x4, fixed_abs, tag = 'smem constant byte address 0x4 - core index']
  #allocation1 [shape = 'u32[144,128]{1,0:T(1,128)}', space=vmem, size = 0x12000, scoped, tag = 'internal scratch']
  #allocation2 [shape = 'f32[8,128]{1,0:T(8,128)}', space=vmem, size = 0x1000, scoped, tag = 'scratch operand']
  #allocation3 [shape = 'f32[12,128]{1,0:T(8,128)}', space=vmem, size = 0x2000, scoped, tag = 'scratch operand']
  %s0 = inlined_call_operand.vmem [shape: f32[2,12,256], index: 0, kind: input, shape index: {}]
  %s1 = inlined_call_operand.vmem [shape: f32[2,12,256], index: 1, kind: input, shape index: {}]
  %s2 = inlined_call_operand.vmem [shape: f32[2,4,256], index: 2, kind: input, shape index: {}]
  %s3 = inlined_call_operand.vmem [shape: f32[2,4,256], index: 3, kind: input, shape index: {}]
  %s4 = inlined_call_operand.vmem [shape: f32[2,4,256], index: 4, kind: input, shape index: {}]
  %s5 = inlined_call_operand.vmem [shape: f32[8,256], index: 5, kind: output, shape index: {}]
  %s6 = sld [smem:[#allocation0]]
  $region137: #{temporal_pix2pix_loss.1} parent=0
    _
  %s8 = ssub.s32 1, %s6
  %s9 = scalar_select 0, %s8, %s6
  $region1: #{temporal_pix2pix_loss.1} parent=0
    #allocation4 [shape = 'u8[16384]{0}', space=vmem, size = 0x4000, scoped, tag = 'input window, operand 0']
    #allocation5 [shape = 'u8[16384]{0}', space=vmem, size = 0x4000, scoped, tag = 'input window, operand 1']
    loop: start=0, step=1, limit=6
    $region2: #{temporal_pix2pix_loss.1} parent=1 // loop_pre_header
      _
    $region3: #{temporal_pix2pix_loss.1} parent=1 // loop_header
      %s11 = sphi 0, %s15
      %p12 = scmp.ge.s32.totalorder %s11, 6
      %s18 = sphi 0, %s30
      %s19 = sphi 0, %s26
      %s20 = sphi 0, %s18
      %s21 = sphi 0, %s19
      %s22 = sphi 0, %s20
      %s23 = sphi 0, %s21
      %s35 = sphi 0, %s37
      %s38 = sphi 0, %s35
      %s39 = sphi 0, %s38
      %s55 = sphi 0, %s39
      %s63 = sphi 0, %s65
      %s66 = sphi 0, %s63
      %s67 = sphi 0, %s66
      %s83 = sphi 0, %s67
      %s91 = sphi 0, %s93
      %s94 = sphi 0, %s91
      %s95 = sphi 0, %s94
      %s111 = sphi 0, %s95
      %s119 = sphi 0, %s121
      %s122 = sphi 0, %s119
      %s123 = sphi 0, %s122
      %s139 = sphi 0, %s123
      %s147 = sphi 0, %s149
      %s150 = sphi 0, %s147
      %s151 = sphi 0, %s150
      %s167 = sphi 0, %s151
      %s173 = sphi 0, %s175
      %s176 = sphi 0, %s173
      %s177 = sphi 0, %s176
      %s193 = sphi 0, %s177
    $region4: #{temporal_pix2pix_loss.1} parent=1 // loop_header_branch
      %14 = sbr.rel (%p12) target = $region8
    $region5: #{temporal_pix2pix_loss.1} parent=1 // loop_body
      %s16 = ssub.s32 %s11, 1
      %s17 = ssub.s32 %s11, 2
      %s24 = sadd.s32 1, %s19
      %p25 = scmp.ge.s32.totalorder %s24, 2
      %s26 = scalar_select %p25, 0, %s24
      %s27 = sadd.s32 1, %s18
      %s28 = scalar_select %p25, %s27, %s18
      %p29 = scmp.ge.s32.totalorder %s28, 2
      %s30 = scalar_select %p29, 0, %s28
      %s31 = ssub.s32 %s19, %s26
      %s32 = ssub.s32 %s18, %s30
      %s33 = sor.u32 %s31, %s32
      %p34 = scmp.eq.s32.totalorder %s33, 0
      %s36 = sadd.s32 %s35, 1
      %s37 = scalar_select %p34, %s35, %s36
      %p40 = pneg %p34
      %p41 = scmp.eq.s32.totalorder %s11, 3
      %p42 = por %p40, %p41
      %p43 = scmp.ne.s32.totalorder %s35, %s38
      %p44 = scmp.eq.s32.totalorder %s11, 0
      %p45 = por %p43, %p44
      %p46 = scmp.ne.s32.totalorder %s35, %s38
      %p47 = scmp.eq.s32.totalorder %s16, 3
      %p48 = por %p46, %p47
      %p49 = scmp.ne.s32.totalorder %s38, %s39
      %p50 = scmp.eq.s32.totalorder %s16, 0
      %p51 = por %p49, %p50
      %p52 = scmp.ne.s32.totalorder %s38, %s39
      %p53 = scmp.eq.s32.totalorder %s17, 3
      %p54 = por %p52, %p53
      %p56 = scmp.ne.s32.totalorder %s39, %s55
      %p57 = scmp.eq.s32.totalorder %s17, 0
      %p58 = por %p56, %p57
      %s59 = ssub.s32 %s19, %s26
      %s60 = ssub.s32 %s18, %s30
      %s61 = sor.u32 %s59, %s60
      %p62 = scmp.eq.s32.totalorder %s61, 0
      %s64 = sadd.s32 %s63, 1
      %s65 = scalar_select %p62, %s63, %s64
      %p68 = pneg %p62
      %p69 = scmp.eq.s32.totalorder %s11, 3
      %p70 = por %p68, %p69
      %p71 = scmp.ne.s32.totalorder %s63, %s66
      %p72 = scmp.eq.s32.totalorder %s11, 0
      %p73 = por %p71, %p72
      %p74 = scmp.ne.s32.totalorder %s63, %s66
      %p75 = scmp.eq.s32.totalorder %s16, 3
      %p76 = por %p74, %p75
      %p77 = scmp.ne.s32.totalorder %s66, %s67
      %p78 = scmp.eq.s32.totalorder %s16, 0
      %p79 = por %p77, %p78
      %p80 = scmp.ne.s32.totalorder %s66, %s67
      %p81 = scmp.eq.s32.totalorder %s17, 3
      %p82 = por %p80, %p81
      %p84 = scmp.ne.s32.totalorder %s67, %s83
      %p85 = scmp.eq.s32.totalorder %s17, 0
      %p86 = por %p84, %p85
      %s87 = ssub.s32 %s19, %s26
      %s88 = ssub.s32 %s18, %s30
      %s89 = sor.u32 %s87, %s88
      %p90 = scmp.eq.s32.totalorder %s89, 0
      %s92 = sadd.s32 %s91, 1
      %s93 = scalar_select %p90, %s91, %s92
      %p96 = pneg %p90
      %p97 = scmp.eq.s32.totalorder %s11, 3
      %p98 = por %p96, %p97
      %p99 = scmp.ne.s32.totalorder %s91, %s94
      %p100 = scmp.eq.s32.totalorder %s11, 0
      %p101 = por %p99, %p100
      %p102 = scmp.ne.s32.totalorder %s91, %s94
      %p103 = scmp.eq.s32.totalorder %s16, 3
      %p104 = por %p102, %p103
      %p105 = scmp.ne.s32.totalorder %s94, %s95
      %p106 = scmp.eq.s32.totalorder %s16, 0
      %p107 = por %p105, %p106
      %p108 = scmp.ne.s32.totalorder %s94, %s95
      %p109 = scmp.eq.s32.totalorder %s17, 3
      %p110 = por %p108, %p109
      %p112 = scmp.ne.s32.totalorder %s95, %s111
      %p113 = scmp.eq.s32.totalorder %s17, 0
      %p114 = por %p112, %p113
      %s115 = ssub.s32 %s19, %s26
      %s116 = ssub.s32 %s18, %s30
      %s117 = sor.u32 %s115, %s116
      %p118 = scmp.eq.s32.totalorder %s117, 0
      %s120 = sadd.s32 %s119, 1
      %s121 = scalar_select %p118, %s119, %s120
      %p124 = pneg %p118
      %p125 = scmp.eq.s32.totalorder %s11, 3
      %p126 = por %p124, %p125
      %p127 = scmp.ne.s32.totalorder %s119, %s122
      %p128 = scmp.eq.s32.totalorder %s11, 0
      %p129 = por %p127, %p128
      %p130 = scmp.ne.s32.totalorder %s119, %s122
      %p131 = scmp.eq.s32.totalorder %s16, 3
      %p132 = por %p130, %p131
      %p133 = scmp.ne.s32.totalorder %s122, %s123
      %p134 = scmp.eq.s32.totalorder %s16, 0
      %p135 = por %p133, %p134
      %p136 = scmp.ne.s32.totalorder %s122, %s123
      %p137 = scmp.eq.s32.totalorder %s17, 3
      %p138 = por %p136, %p137
      %p140 = scmp.ne.s32.totalorder %s123, %s139
      %p141 = scmp.eq.s32.totalorder %s17, 0
      %p142 = por %p140, %p141
      %s143 = ssub.s32 %s19, %s26
      %s144 = ssub.s32 %s18, %s30
      %s145 = sor.u32 %s143, %s144
      %p146 = scmp.eq.s32.totalorder %s145, 0
      %s148 = sadd.s32 %s147, 1
      %s149 = scalar_select %p146, %s147, %s148
      %p152 = pneg %p146
      %p153 = scmp.eq.s32.totalorder %s11, 3
      %p154 = por %p152, %p153
      %p155 = scmp.ne.s32.totalorder %s147, %s150
      %p156 = scmp.eq.s32.totalorder %s11, 0
      %p157 = por %p155, %p156
      %p158 = scmp.ne.s32.totalorder %s147, %s150
      %p159 = scmp.eq.s32.totalorder %s16, 3
      %p160 = por %p158, %p159
      %p161 = scmp.ne.s32.totalorder %s150, %s151
      %p162 = scmp.eq.s32.totalorder %s16, 0
      %p163 = por %p161, %p162
      %p164 = scmp.ne.s32.totalorder %s150, %s151
      %p165 = scmp.eq.s32.totalorder %s17, 3
      %p166 = por %p164, %p165
      %p168 = scmp.ne.s32.totalorder %s151, %s167
      %p169 = scmp.eq.s32.totalorder %s17, 0
      %p170 = por %p168, %p169
      %s171 = ssub.s32 %s18, %s30
      %p172 = scmp.eq.s32.totalorder %s171, 0
      %s174 = sadd.s32 %s173, 1
      %s175 = scalar_select %p172, %s173, %s174
      %p178 = pneg %p172
      %p179 = scmp.eq.s32.totalorder %s11, 3
      %p180 = por %p178, %p179
      %p181 = scmp.ne.s32.totalorder %s173, %s176
      %p182 = scmp.eq.s32.totalorder %s11, 0
      %p183 = por %p181, %p182
      %p184 = scmp.ne.s32.totalorder %s173, %s176
      %p185 = scmp.eq.s32.totalorder %s16, 3
      %p186 = por %p184, %p185
      %p187 = scmp.ne.s32.totalorder %s176, %s177
      %p188 = scmp.eq.s32.totalorder %s16, 0
      %p189 = por %p187, %p188
      %p190 = scmp.ne.s32.totalorder %s176, %s177
      %p191 = scmp.eq.s32.totalorder %s17, 3
      %p192 = por %p190, %p191
      %p194 = scmp.ne.s32.totalorder %s177, %s193
      %p195 = scmp.eq.s32.totalorder %s17, 0
      %p196 = por %p194, %p195
      %p197 = scmp.le.s32.totalorder 1, %s11
      %p198 = scmp.lt.s32.totalorder %s11, 5
      %p199 = pnand %p197, %p198
      %p200 = pneg %p199
      // Predicated region
      $region9: #{temporal_pix2pix_loss.1} parent=5 // pred_check
        _
      $region10: #{temporal_pix2pix_loss.1} parent=5 // pred_check_branch
        %202 = sbr.rel (%p199) target = $region12
      $region11: #{temporal_pix2pix_loss.1} parent=5 // pred_region
        %s203 = ssub.s32 %s11, 1
      $region12: #{temporal_pix2pix_loss.1} parent=5 // pred_fallthru
        _
      %p204 = scmp.lt.s32.totalorder %s11, 4
      // Predicated region
      $region13: #{temporal_pix2pix_loss.1} parent=5 // pred_check
        %p205 = pneg %p204
      $region14: #{temporal_pix2pix_loss.1} parent=5 // pred_check_branch
        %207 = sbr.rel (%p205) target = $region16
      $region15: #{temporal_pix2pix_loss.1} parent=5 // pred_region
        // Predicated region
        $region17: #{temporal_pix2pix_loss.1} parent=15 // pred_check
          %p208 = pneg %p45
        $region18: #{temporal_pix2pix_loss.1} parent=15 // pred_check_branch
          %210 = sbr.rel (%p208) target = $region20
        $region19: #{temporal_pix2pix_loss.1} parent=15 // pred_region
          %s211 = sand.u32 %s35, 1
          %s212 = sand.u32 %s35, 1
          %s213 = smul.addr %s212, 16
          %s214 = scalar_lea.vmem [#allocation4], %s213
          %s215 = smul.addr %s19, 4
          %s216 = sadd.s32 %s18, %s215
          %s217 = smul.addr %s216, 8
          %s218 = scalar_lea.vmem %s0, %s217
          // Predicated region
          $region21: #{temporal_pix2pix_loss.1} parent=19 // pred_check
            _
          $region22: #{temporal_pix2pix_loss.1} parent=19 // pred_check_branch
            %220 = sbr.rel (0) target = $region24
          $region23: #{temporal_pix2pix_loss.1} parent=19 // pred_region
            // Predicated region
            $region25: #{temporal_pix2pix_loss.1} parent=23 // pred_check
              _
            $region26: #{temporal_pix2pix_loss.1} parent=23 // pred_check_branch
              %222 = sbr.rel (0) target = $region28
            $region27: #{temporal_pix2pix_loss.1} parent=23 // pred_region
              // Predicated region
              $region40: #{temporal_pix2pix_loss.1} parent=27 // pred_check
                _
              $region41: #{temporal_pix2pix_loss.1} parent=27 // pred_check_branch
                %240 = sbr.rel (0) target = $region43
              $region42: #{temporal_pix2pix_loss.1} parent=27 // pred_region
                loop: start=0, step=1, limit=1
                $region44: #{temporal_pix2pix_loss.1} parent=42 // loop_pre_header
                  _
                $region45: #{temporal_pix2pix_loss.1} parent=42 // loop_header
                  %s242 = sphi 0, %s246
                  %p243 = scmp.ge.s32.totalorder %s242, 1
                  %s247 = sphi %s218, %s218
                  %s248 = sphi %s214, %s214
                $region46: #{temporal_pix2pix_loss.1} parent=42 // loop_header_branch
                  %245 = sbr.rel (%p243) target = $region50
                $region47: #{temporal_pix2pix_loss.1} parent=42 // loop_body
                  %v249 = vld [vmem:[%s247] sm:$0xff]
                  %250 = vst [vmem:[%s248] sm:$0xff] %v249
                  %v251 = vld [vmem:[%s247 + $0x10] sm:$0xff]
                  %252 = vst [vmem:[%s248 + $0x8] sm:$0xff] %v251
                $region48: #{temporal_pix2pix_loss.1} parent=42 // loop_footer
                  %s246 = sadd.s32 1, %s242
                $region49: #{temporal_pix2pix_loss.1} parent=42 // loop_footer_branch
                  %241 = sbr.rel target = $region45
                $region50: #{temporal_pix2pix_loss.1} parent=42 // loop_exit
                  _
              $region43: #{temporal_pix2pix_loss.1} parent=27 // pred_fallthru
                _
              // Predicated region
              $region51: #{temporal_pix2pix_loss.1} parent=27 // pred_check
                _
              $region52: #{temporal_pix2pix_loss.1} parent=27 // pred_check_branch
                %254 = sbr.rel target = $region54
              $region53: #{temporal_pix2pix_loss.1} parent=27 // pred_region
                _
              $region54: #{temporal_pix2pix_loss.1} parent=27 // pred_fallthru
                _
            $region28: #{temporal_pix2pix_loss.1} parent=23 // pred_fallthru
              _
            // Predicated region
            $region29: #{temporal_pix2pix_loss.1} parent=23 // pred_check
              _
            $region30: #{temporal_pix2pix_loss.1} parent=23 // pred_check_branch
              %224 = sbr.rel target = $region32
            $region31: #{temporal_pix2pix_loss.1} parent=23 // pred_region
              %s226 = ssub.s32 256, 1
              loop: start=0, step=1, limit=1
              $region33: #{temporal_pix2pix_loss.1} parent=31 // loop_pre_header
                _
              $region34: #{temporal_pix2pix_loss.1} parent=31 // loop_header
                %s228 = sphi 0, %s232
                %p229 = scmp.ge.s32.totalorder %s228, 1
                %s233 = sphi %s218, %s218
                %s234 = sphi %s214, %s214
              $region35: #{temporal_pix2pix_loss.1} parent=31 // loop_header_branch
                %231 = sbr.rel (%p229) target = $region39
              $region36: #{temporal_pix2pix_loss.1} parent=31 // loop_body
                %v235 = vld [vmem:[%s233] sm:%s226]
                %236 = vst [vmem:[%s234] sm:%s226] %v235
                %v237 = vld [vmem:[%s233 + $0x10] sm:%s226]
                %238 = vst [vmem:[%s234 + $0x8] sm:%s226] %v237
              $region37: #{temporal_pix2pix_loss.1} parent=31 // loop_footer
                %s232 = sadd.s32 1, %s228
              $region38: #{temporal_pix2pix_loss.1} parent=31 // loop_footer_branch
                %227 = sbr.rel target = $region34
              $region39: #{temporal_pix2pix_loss.1} parent=31 // loop_exit
                _
            $region32: #{temporal_pix2pix_loss.1} parent=23 // pred_fallthru
              _
          $region24: #{temporal_pix2pix_loss.1} parent=19 // pred_fallthru
            _
          %255 = vnop
        $region20: #{temporal_pix2pix_loss.1} parent=15 // pred_fallthru
          _
        // Predicated region
        $region55: #{temporal_pix2pix_loss.1} parent=15 // pred_check
          %p256 = pneg %p73
        $region56: #{temporal_pix2pix_loss.1} parent=15 // pred_check_branch
          %258 = sbr.rel (%p256) target = $region58
        $region57: #{temporal_pix2pix_loss.1} parent=15 // pred_region
          %s259 = sand.u32 %s63, 1
          %s260 = sand.u32 %s63, 1
          %s261 = smul.addr %s260, 16
          %s262 = scalar_lea.vmem [#allocation5], %s261
          %s263 = smul.addr %s19, 4
          %s264 = sadd.s32 %s18, %s263
          %s265 = smul.addr %s264, 8
          %s266 = scalar_lea.vmem %s1, %s265
          // Predicated region
          $region59: #{temporal_pix2pix_loss.1} parent=57 // pred_check
            _
          $region60: #{temporal_pix2pix_loss.1} parent=57 // pred_check_branch
            %268 = sbr.rel (0) target = $region62
          $region61: #{temporal_pix2pix_loss.1} parent=57 // pred_region
            // Predicated region
            $region63: #{temporal_pix2pix_loss.1} parent=61 // pred_check
              _
            $region64: #{temporal_pix2pix_loss.1} parent=61 // pred_check_branch
              %270 = sbr.rel (0) target = $region66
            $region65: #{temporal_pix2pix_loss.1} parent=61 // pred_region
              // Predicated region
              $region78: #{temporal_pix2pix_loss.1} parent=65 // pred_check
                _
              $region79: #{temporal_pix2pix_loss.1} parent=65 // pred_check_branch
                %288 = sbr.rel (0) target = $region81
              $region80: #{temporal_pix2pix_loss.1} parent=65 // pred_region
                loop: start=0, step=1, limit=1
                $region82: #{temporal_pix2pix_loss.1} parent=80 // loop_pre_header
                  _
                $region83: #{temporal_pix2pix_loss.1} parent=80 // loop_header
                  %s290 = sphi 0, %s294
                  %p291 = scmp.ge.s32.totalorder %s290, 1
                  %s295 = sphi %s266, %s266
                  %s296 = sphi %s262, %s262
                $region84: #{temporal_pix2pix_loss.1} parent=80 // loop_header_branch
                  %293 = sbr.rel (%p291) target = $region88
                $region85: #{temporal_pix2pix_loss.1} parent=80 // loop_body
                  %v297 = vld [vmem:[%s295] sm:$0xff]
                  %298 = vst [vmem:[%s296] sm:$0xff] %v297
                  %v299 = vld [vmem:[%s295 + $0x10] sm:$0xff]
                  %300 = vst [vmem:[%s296 + $0x8] sm:$0xff] %v299
                $region86: #{temporal_pix2pix_loss.1} parent=80 // loop_footer
                  %s294 = sadd.s32 1, %s290
                $region87: #{temporal_pix2pix_loss.1} parent=80 // loop_footer_branch
                  %289 = sbr.rel target = $region83
                $region88: #{temporal_pix2pix_loss.1} parent=80 // loop_exit
                  _
              $region81: #{temporal_pix2pix_loss.1} parent=65 // pred_fallthru
                _
              // Predicated region
              $region89: #{temporal_pix2pix_loss.1} parent=65 // pred_check
                _
              $region90: #{temporal_pix2pix_loss.1} parent=65 // pred_check_branch
                %302 = sbr.rel target = $region92
              $region91: #{temporal_pix2pix_loss.1} parent=65 // pred_region
                _
              $region92: #{temporal_pix2pix_loss.1} parent=65 // pred_fallthru
                _
            $region66: #{temporal_pix2pix_loss.1} parent=61 // pred_fallthru
              _
            // Predicated region
            $region67: #{temporal_pix2pix_loss.1} parent=61 // pred_check
              _
            $region68: #{temporal_pix2pix_loss.1} parent=61 // pred_check_branch
              %272 = sbr.rel target = $region70
            $region69: #{temporal_pix2pix_loss.1} parent=61 // pred_region
              %s274 = ssub.s32 256, 1
              loop: start=0, step=1, limit=1
              $region71: #{temporal_pix2pix_loss.1} parent=69 // loop_pre_header
                _
              $region72: #{temporal_pix2pix_loss.1} parent=69 // loop_header
                %s276 = sphi 0, %s280
                %p277 = scmp.ge.s32.totalorder %s276, 1
                %s281 = sphi %s266, %s266
                %s282 = sphi %s262, %s262
              $region73: #{temporal_pix2pix_loss.1} parent=69 // loop_header_branch
                %279 = sbr.rel (%p277) target = $region77
              $region74: #{temporal_pix2pix_loss.1} parent=69 // loop_body
                %v283 = vld [vmem:[%s281] sm:%s274]
                %284 = vst [vmem:[%s282] sm:%s274] %v283
                %v285 = vld [vmem:[%s281 + $0x10] sm:%s274]
                %286 = vst [vmem:[%s282 + $0x8] sm:%s274] %v285
              $region75: #{temporal_pix2pix_loss.1} parent=69 // loop_footer
                %s280 = sadd.s32 1, %s276
              $region76: #{temporal_pix2pix_loss.1} parent=69 // loop_footer_branch
                %275 = sbr.rel target = $region72
              $region77: #{temporal_pix2pix_loss.1} parent=69 // loop_exit
                _
            $region70: #{temporal_pix2pix_loss.1} parent=61 // pred_fallthru
              _
          $region62: #{temporal_pix2pix_loss.1} parent=57 // pred_fallthru
            _
          %303 = vnop
        $region58: #{temporal_pix2pix_loss.1} parent=15 // pred_fallthru
          _
        // Predicated region
        $region93: #{temporal_pix2pix_loss.1} parent=15 // pred_check
          %p304 = pneg %p101
        $region94: #{temporal_pix2pix_loss.1} parent=15 // pred_check_branch
          %306 = sbr.rel (%p304) target = $region96
        $region95: #{temporal_pix2pix_loss.1} parent=15 // pred_region
          %p307 = scmp.lt.s32.totalorder %s19, 1
          %s308 = scalar_select %p307, %s19, 1
          %p309 = scmp.lt.s32.totalorder %s18, 1
          %s310 = scalar_select %p309, %s18, 1
          %s311 = smul.addr %s308, 2
          %s312 = sadd.s32 %s310, %s311
          %s313 = smul.addr %s312, 4
          %s314 = scalar_lea.vmem %s2, %s313
        $region96: #{temporal_pix2pix_loss.1} parent=15 // pred_fallthru
          _
        // Predicated region
        $region97: #{temporal_pix2pix_loss.1} parent=15 // pred_check
          %p315 = pneg %p129
        $region98: #{temporal_pix2pix_loss.1} parent=15 // pred_check_branch
          %317 = sbr.rel (%p315) target = $region100
        $region99: #{temporal_pix2pix_loss.1} parent=15 // pred_region
          %p318 = scmp.lt.s32.totalorder %s19, 1
          %s319 = scalar_select %p318, %s19, 1
          %p320 = scmp.lt.s32.totalorder %s18, 1
          %s321 = scalar_select %p320, %s18, 1
          %s322 = smul.addr %s319, 2
          %s323 = sadd.s32 %s321, %s322
          %s324 = smul.addr %s323, 4
          %s325 = scalar_lea.vmem %s3, %s324
        $region100: #{temporal_pix2pix_loss.1} parent=15 // pred_fallthru
          _
        // Predicated region
        $region101: #{temporal_pix2pix_loss.1} parent=15 // pred_check
          %p326 = pneg %p157
        $region102: #{temporal_pix2pix_loss.1} parent=15 // pred_check_branch
          %328 = sbr.rel (%p326) target = $region104
        $region103: #{temporal_pix2pix_loss.1} parent=15 // pred_region
          %p329 = scmp.lt.s32.totalorder %s19, 1
          %s330 = scalar_select %p329, %s19, 1
          %p331 = scmp.lt.s32.totalorder %s18, 1
          %s332 = scalar_select %p331, %s18, 1
          %s333 = smul.addr %s330, 2
          %s334 = sadd.s32 %s332, %s333
          %s335 = smul.addr %s334, 4
          %s336 = scalar_lea.vmem %s4, %s335
        $region104: #{temporal_pix2pix_loss.1} parent=15 // pred_fallthru
          _
      $region16: #{temporal_pix2pix_loss.1} parent=5 // pred_fallthru
        _
      %p337 = scmp.le.s32.totalorder 1, %s11
      %p338 = scmp.lt.s32.totalorder %s11, 5
      %p339 = pnand %p337, %p338
      %p340 = pneg %p339
      // Predicated region
      $region105: #{temporal_pix2pix_loss.1} parent=5 // pred_check
        _
      $region106: #{temporal_pix2pix_loss.1} parent=5 // pred_check_branch
        %342 = sbr.rel (%p339) target = $region108
      $region107: #{temporal_pix2pix_loss.1} parent=5 // pred_region
        %s343 = ssub.s32 %s11, 1
        %s344 = sand.u32 %s38, 1
        %s345 = sand.u32 %s38, 1
        %s346 = smul.addr %s345, 16
        %s347 = scalar_lea.vmem [#allocation4], %s346
        // Predicated region
        $region109: #{temporal_pix2pix_loss.1} parent=107 // pred_check
          %p348 = pneg %p51
        $region110: #{temporal_pix2pix_loss.1} parent=107 // pred_check_branch
          %350 = sbr.rel (%p348) target = $region112
        $region111: #{temporal_pix2pix_loss.1} parent=107 // pred_region
          _
        $region112: #{temporal_pix2pix_loss.1} parent=107 // pred_fallthru
          _
        %s351 = sand.u32 %s66, 1
        %s352 = sand.u32 %s66, 1
        %s353 = smul.addr %s352, 16
        %s354 = scalar_lea.vmem [#allocation5], %s353
        // Predicated region
        $region113: #{temporal_pix2pix_loss.1} parent=107 // pred_check
          %p355 = pneg %p79
        $region114: #{temporal_pix2pix_loss.1} parent=107 // pred_check_branch
          %357 = sbr.rel (%p355) target = $region116
        $region115: #{temporal_pix2pix_loss.1} parent=107 // pred_region
          _
        $region116: #{temporal_pix2pix_loss.1} parent=107 // pred_fallthru
          _
        %s358 = sand.u32 %s38, 1
        %s359 = sand.u32 %s38, 1
        %s360 = smul.addr %s359, 16
        %s361 = scalar_lea.vmem [#allocation4], %s360
        %p362 = pneg %p51
        %p363 = pneg %p48
        %s364 = sand.u32 %s66, 1
        %s365 = sand.u32 %s66, 1
        %s366 = smul.addr %s365, 16
        %s367 = scalar_lea.vmem [#allocation5], %s366
        %p368 = pneg %p79
        %p369 = pneg %p76
        %p370 = scmp.lt.s32.totalorder %s21, 1
        %s371 = scalar_select %p370, %s21, 1
        %p372 = scmp.lt.s32.totalorder %s20, 1
        %s373 = scalar_select %p372, %s20, 1
        %s374 = smul.addr %s371, 2
        %s375 = sadd.s32 %s373, %s374
        %s376 = smul.addr %s375, 4
        %s377 = scalar_lea.vmem %s2, %s376
        %p378 = pneg %p107
        %p379 = pneg %p104
        %p380 = scmp.lt.s32.totalorder %s21, 1
        %s381 = scalar_select %p380, %s21, 1
        %p382 = scmp.lt.s32.totalorder %s20, 1
        %s383 = scalar_select %p382, %s20, 1
        %s384 = smul.addr %s381, 2
        %s385 = sadd.s32 %s383, %s384
        %s386 = smul.addr %s385, 4
        %s387 = scalar_lea.vmem %s3, %s386
        %p388 = pneg %p135
        %p389 = pneg %p132
        %p390 = scmp.lt.s32.totalorder %s21, 1
        %s391 = scalar_select %p390, %s21, 1
        %p392 = scmp.lt.s32.totalorder %s20, 1
        %s393 = scalar_select %p392, %s20, 1
        %s394 = smul.addr %s391, 2
        %s395 = sadd.s32 %s393, %s394
        %s396 = smul.addr %s395, 4
        %s397 = scalar_lea.vmem %s4, %s396
        %p398 = pneg %p163
        %p399 = pneg %p160
        %p400 = pneg %p189
        %p401 = pneg %p186
        %p402 = scmp.lt.s32.totalorder %s20, 1
        %s403 = scalar_select %p402, %s20, 1
        %s404 = smul.addr %s403, 8
        %s405 = scalar_lea.vmem %s5, %s404
        %p406 = scmp.lt.s32.totalorder %s21, 1
        %s407 = scalar_select %p406, %s21, 1
        %p408 = scmp.lt.s32.totalorder %s20, 1
        %s409 = scalar_select %p408, %s20, 1
        %s410 = smul.addr %s407, 2
        %s411 = sadd.s32 %s409, %s410
        %s412 = smul.addr %s411, 4
        %s413 = scalar_lea.vmem %s2, %s412
        %p414 = scmp.lt.s32.totalorder %s21, 1
        %s415 = scalar_select %p414, %s21, 1
        %p416 = scmp.lt.s32.totalorder %s20, 1
        %s417 = scalar_select %p416, %s20, 1
        %s418 = smul.addr %s415, 2
        %s419 = sadd.s32 %s417, %s418
        %s420 = smul.addr %s419, 4
        %s421 = scalar_lea.vmem %s3, %s420
        %p422 = scmp.lt.s32.totalorder %s21, 1
        %s423 = scalar_select %p422, %s21, 1
        %p424 = scmp.lt.s32.totalorder %s20, 1
        %s425 = scalar_select %p424, %s20, 1
        %s426 = smul.addr %s423, 2
        %s427 = sadd.s32 %s425, %s426
        %s428 = smul.addr %s427, 4
        %s429 = scalar_lea.vmem %s4, %s428
        %p430 = scmp.lt.s32.totalorder %s20, 1
        %s431 = scalar_select %p430, %s20, 1
        %s432 = smul.addr %s431, 8
        %s433 = scalar_lea.vmem %s5, %s432
        %p434 = scmp.eq.s32.totalorder %s21, 0
        // Predicated region
        $region117: #{temporal_pix2pix_loss.1} parent=107 // pred_check
          %p435 = pneg %p434
        $region118: #{temporal_pix2pix_loss.1} parent=107 // pred_check_branch
          %437 = sbr.rel (%p435) target = $region120
        $region119: #{temporal_pix2pix_loss.1} parent=107 // pred_region
          %438 = vst [vmem:[#allocation2] sm:$0xff] 0.0
        $region120: #{temporal_pix2pix_loss.1} parent=107 // pred_fallthru
          _
        %v439 = vld [vmem:[%s347] sm:$0xff]
        %v440 = vld [vmem:[%s347 + $0x8] sm:$0xf]
        %v441 = vld [vmem:[%s354] sm:$0xff]
        %v442 = vld [vmem:[%s354 + $0x8] sm:$0xf]
        %v443 = vld [vmem:[%s413] sm:$0xf]
        %v444 = vld [vmem:[%s421] sm:$0xf]
        %v445 = vsub.f32 %v439, %v441
        %v446 = vsub.f32 %v440, %v442
        %v447 = vand.u32 2147483647, %v445
        %v448 = vand.u32 2147483647, %v446
        %v449 = vsub.f32 %v443, %v444
        %v450 = vand.u32 2147483647, %v444
        %v451 = vld [vmem:[%s429] sm:$0xf]
        %v452 = vand.u32 2147483647, %v451
        %v453 = vld [vmem:[#allocation2] sm:$0x1]
        %vm454 = vcmask 1043456
        %v455 = vsel %vm454, %v448, 0.0
        %v456 = vadd.f32 %v447, %v455
        %v457 = vrot.slane %v456, 4
        %v458 = vadd.f32 %v456, %v457
        %v459 = vrot.slane %v458, 2
        %v460 = vadd.f32 %v458, %v459
        %v461 = vrot.slane %v460, 1
        %v462 = vadd.f32 %v460, %v461
        %v463 = vadd.f32 %v453, %v462
        %464 = vst [vmem:[#allocation2] sm:$0x1] %v463
        %v465 = vld [vmem:[#allocation2 + $0x2] sm:$0x1]
        %v466 = vand.u32 2147483647, %v449
        %v467 = vsel %vm454, %v466, 0.0
        %v468 = vrot.slane %v467, 4
        %v469 = vadd.f32 %v467, %v468
        %v470 = vrot.slane %v469, 2
        %v471 = vadd.f32 %v469, %v470
        %v472 = vrot.slane %v471, 1
        %v473 = vadd.f32 %v471, %v472
        %v474 = vadd.f32 %v465, %v473
        %475 = vst [vmem:[#allocation2 + $0x2] sm:$0x1] %v474
        %476 = vst [vmem:[#allocation3] sm:$0xff] %v447
        %477 = vst [vmem:[#allocation3 + $0x8] sm:$0xf] %v448
        %v478 = vld [vmem:[#allocation3] ss:$3 sm:$0xf]
        %s479 = scalar_lea.vmem [#allocation3], 1
        %v480 = vld [vmem:[%s479] ss:$3 sm:$0xf]
        %v481 = vadd.f32 %v478, %v480
        %s482 = scalar_lea.vmem [#allocation3], 2
        %v483 = vld [vmem:[%s482] ss:$3 sm:$0xf]
        %v484 = vadd.f32 %v481, %v483
        %v485 = vld [vmem:[#allocation2 + $0x1] sm:$0x1]
        %v486 = vmul.f32 %v484, %v450
        %v487 = vsel %vm454, %v486, 0.0
        %v488 = vrot.slane %v487, 4
        %v489 = vadd.f32 %v487, %v488
        %v490 = vrot.slane %v489, 2
        %v491 = vadd.f32 %v489, %v490
        %v492 = vrot.slane %v491, 1
        %v493 = vadd.f32 %v491, %v492
        %v494 = vadd.f32 %v485, %v493
        %495 = vst [vmem:[#allocation2 + $0x1] sm:$0x1] %v494
        %v496 = vld [vmem:[#allocation2 + $0x5] sm:$0x1]
        %v497 = vmul.f32 %v484, %v452
        %v498 = vsel %vm454, %v497, 0.0
        %v499 = vrot.slane %v498, 4
        %v500 = vadd.f32 %v498, %v499
        %v501 = vrot.slane %v500, 2
        %v502 = vadd.f32 %v500, %v501
        %v503 = vrot.slane %v502, 1
        %v504 = vadd.f32 %v502, %v503
        %v505 = vadd.f32 %v496, %v504
        %506 = vst [vmem:[#allocation2 + $0x5] sm:$0x1] %v505
        %vm509 = vcmask 1042432
        %v510 = vrot.slane %v445, 5
        %v511 = vrot.slane %v446, 5
        %v512 = vsel %vm509, %v510, %v511
        %v515 = vsub.f32 %v445, %v510
        %v516 = vsub.f32 %v446, %v512
        %v517 = vld [vmem:[#allocation2 + $0x3] sm:$0x1]
        %v518 = vmul.f32 %v515, %v515
        %v519 = vmul.f32 %v516, %v516
        %vm522 = vcmask 1044480
        %v523 = vrot.slane %v518, 3
        %v524 = vrot.slane %v519, 3
        %v525 = vsel %vm522, %v523, %v524
        %vm528 = vcmask 1040384
        %v529 = vsel %vm528, %v524, 0.0
        %v530 = vadd.f32 %v525, %v529
        %v531 = vrot.slane %v530, 4
        %v532 = vadd.f32 %v530, %v531
        %v533 = vrot.slane %v532, 2
        %v534 = vadd.f32 %v532, %v533
        %v535 = vrot.slane %v534, 1
        %v536 = vadd.f32 %v534, %v535
        %v537 = vadd.f32 %v517, %v536
        %538 = vst [vmem:[#allocation2 + $0x3] sm:$0x1] %v537
        %v540 = vrot.slane %v449, 7
        %v542 = vsub.f32 %v449, %v540
        %v543 = vld [vmem:[#allocation2 + $0x4] sm:$0x1]
        %v544 = vmul.f32 %v542, %v542
        %v546 = vrot.slane %v544, 1
        %v548 = vsel %vm509, %v546, 0.0
        %v549 = vrot.slane %v548, 4
        %v550 = vadd.f32 %v548, %v549
        %v551 = vrot.slane %v550, 2
        %v552 = vadd.f32 %v550, %v551
        %v553 = vrot.slane %v552, 1
        %v554 = vadd.f32 %v552, %v553
        %v555 = vadd.f32 %v543, %v554
        %556 = vst [vmem:[#allocation2 + $0x4] sm:$0x1] %v555
        %p557 = scmp.eq.s32.totalorder %s21, 1
        // Predicated region
        $region121: #{temporal_pix2pix_loss.1} parent=107 // pred_check
          %p558 = pneg %p557
        $region122: #{temporal_pix2pix_loss.1} parent=107 // pred_check_branch
          %560 = sbr.rel (%p558) target = $region124
        $region123: #{temporal_pix2pix_loss.1} parent=107 // pred_region
          %v561 = vld [vmem:[#allocation2] sm:$0xff]
          %562 = vst [vmem:[%s433] sm:$0xff] %v561
        $region124: #{temporal_pix2pix_loss.1} parent=107 // pred_fallthru
          _
        %p563 = scmp.lt.s32.totalorder %s20, 1
        %s564 = scalar_select %p563, %s20, 1
        %s565 = smul.addr %s564, 8
        %s566 = scalar_lea.vmem %s5, %s565
        // Predicated region
        $region125: #{temporal_pix2pix_loss.1} parent=107 // pred_check
          %p567 = pneg %p186
        $region126: #{temporal_pix2pix_loss.1} parent=107 // pred_check_branch
          %569 = sbr.rel (%p567) target = $region128
        $region127: #{temporal_pix2pix_loss.1} parent=107 // pred_region
          _
        $region128: #{temporal_pix2pix_loss.1} parent=107 // pred_fallthru
          _
      $region108: #{temporal_pix2pix_loss.1} parent=5 // pred_fallthru
        _
      %p570 = scmp.le.s32.totalorder 2, %s11
      // Predicated region
      $region129: #{temporal_pix2pix_loss.1} parent=5 // pred_check
        %p571 = pneg %p570
      $region130: #{temporal_pix2pix_loss.1} parent=5 // pred_check_branch
        %573 = sbr.rel (%p571) target = $region132
      $region131: #{temporal_pix2pix_loss.1} parent=5 // pred_region
        %s574 = ssub.s32 %s11, 2
        // Predicated region
        $region133: #{temporal_pix2pix_loss.1} parent=131 // pred_check
          %p575 = pneg %p192
        $region134: #{temporal_pix2pix_loss.1} parent=131 // pred_check_branch
          %577 = sbr.rel (%p575) target = $region136
        $region135: #{temporal_pix2pix_loss.1} parent=131 // pred_region
          %p578 = scmp.lt.s32.totalorder %s22, 1
          %s579 = scalar_select %p578, %s22, 1
          %s580 = smul.addr %s579, 8
          %s581 = scalar_lea.vmem %s5, %s580
        $region136: #{temporal_pix2pix_loss.1} parent=131 // pred_fallthru
          _
      $region132: #{temporal_pix2pix_loss.1} parent=5 // pred_fallthru
        _
    $region6: #{temporal_pix2pix_loss.1} parent=1 // loop_footer
      %s15 = sadd.s32 1, %s11
    $region7: #{temporal_pix2pix_loss.1} parent=1 // loop_footer_branch
      %10 = sbr.rel target = $region3
    $region8: #{temporal_pix2pix_loss.1} parent=1 // loop_exit
      _

</llo_original>
